<compile_context>
chip_gen: v6e
topology: v6e:2x2x1
jax: 0.10.0
libtpu: 0.0.40
codegen_flags: <defaults>
</compile_context>

<pallas_src>
import functools

import jax
import jax.numpy as jnp
from jax.experimental import pallas as pl
from jax.experimental.pallas import tpu as pltpu


def _convlstm_kernel(wT_ref, bconv_ref, pT_ref, c_ref, wp_ref, bp_ref,
                     h_out_ref, c_out_ref, *, CL):
    # Single fused conv GEMM: [4*CL, K] @ [K, TN] -> [4*CL, TN] (f32 accum).
    pre = jnp.dot(wT_ref[...], pT_ref[...], preferred_element_type=jnp.float32)
    pre = pre + bconv_ref[...]            # one fused bias add ([4*CL,1] bcast)

    c_pre = c_ref[...]                    # [CL, TN]   channel-major, lane dense
    wp = wp_ref[...]                      # [3*CL, TN] peephole weights (f,i,o)
    bp = bp_ref[...]                      # [3*CL, 1]  peephole biases  (f,i,o)

    # Gate order along rows of `pre`: f, i, c(candidate), o.
    f = jax.nn.sigmoid(pre[0 * CL:1 * CL]
                       + wp[0 * CL:1 * CL] * c_pre + bp[0 * CL:1 * CL])
    i = jax.nn.sigmoid(pre[1 * CL:2 * CL]
                       + wp[1 * CL:2 * CL] * c_pre + bp[1 * CL:2 * CL])
    g = jnp.tanh(pre[2 * CL:3 * CL])
    c_cur = f * c_pre + i * g
    o = jax.nn.sigmoid(pre[3 * CL:4 * CL]
                       + wp[2 * CL:3 * CL] * c_cur + bp[2 * CL:3 * CL])
    h_cur = o * jnp.tanh(c_cur)

    h_out_ref[...] = h_cur
    c_out_ref[...] = c_cur


def _im2col_T(x, C, H, W):
    """x: [B, C, H, W] -> transposed 3x3 SAME-conv patches [9*C, B*H*W]."""
    B = x.shape[0]
    xpad = jnp.pad(x, ((0, 0), (0, 0), (1, 1), (1, 1)))
    taps = []
    for di in range(3):
        for dj in range(3):
            sl = xpad[:, :, di:di + H, dj:dj + W]               # [B, C, H, W]
            taps.append(jnp.transpose(sl, (1, 0, 2, 3)).reshape(C, B * H * W))
    return jnp.concatenate(taps, axis=0)                        # [9*C, BHW]


def conv_lstm_cell(x, h, c, wx, wh, bconv, wp, bp):
    """PyTorch layouts (NCHW / OIHW), float32.

    x: [B, Cin, H, W]          h, c: [B, CL, H, W]
    wx: [4, CL, Cin, 3, 3]     wh:   [4, CL, CL, 3, 3]    (gate order f,i,c,o)
    bconv: [4, CL]             (conv_x bias + conv_h bias, pre-summed)
    wp: [3, CL, H, W]          bp: [3, CL]                 (peepholes f,i,o)
    Returns (h_cur, c_cur), each [B, CL, H, W].
    """
    B, CIN, H, W = x.shape
    CL = h.shape[1]
    BHW = B * H * W
    K = 9 * (CIN + CL)

    # ---- layout plumbing (plain JAX, outside the kernel) ----
    pT = jnp.concatenate([_im2col_T(x, CIN, H, W),
                          _im2col_T(h, CL, H, W)], axis=0)       # [K, BHW]
    wxT = jnp.transpose(wx, (0, 1, 3, 4, 2)).reshape(4 * CL, 9 * CIN)
    whT = jnp.transpose(wh, (0, 1, 3, 4, 2)).reshape(4 * CL, 9 * CL)
    wT = jnp.concatenate([wxT, whT], axis=1)                     # [4*CL, K]
    bconv_c = bconv.reshape(4 * CL, 1)
    cT = jnp.transpose(c, (1, 0, 2, 3)).reshape(CL, BHW)         # [CL, BHW]
    wp_l = jnp.tile(wp.reshape(3, CL, 1, H * W),
                    (1, 1, B, 1)).reshape(3 * CL, BHW)           # [3*CL, BHW]
    bp_c = bp.reshape(3 * CL, 1)

    # Lane-dense position tile (multiple of 128); >=2 tiles lets v7x use both TCs.
    if BHW % 256 == 0:
        TN = 256
    elif BHW % 128 == 0:
        TN = 128
    else:
        TN = BHW   # full extent (still legal block shape)
    grid = (BHW // TN,)

    kernel = functools.partial(_convlstm_kernel, CL=CL)
    out_shape = (jax.ShapeDtypeStruct((CL, BHW), jnp.float32),
                 jax.ShapeDtypeStruct((CL, BHW), jnp.float32))

    h_t, c_t = pl.pallas_call(
        kernel,
        out_shape=out_shape,
        grid_spec=pltpu.PrefetchScalarGridSpec(
            num_scalar_prefetch=0,
            grid=grid,
            in_specs=[
                pl.BlockSpec((4 * CL, K), lambda n: (0, 0)),      # fused weights
                pl.BlockSpec((4 * CL, 1), lambda n: (0, 0)),      # fused conv bias
                pl.BlockSpec((K, TN), lambda n: (0, n)),          # patches^T tile
                pl.BlockSpec((CL, TN), lambda n: (0, n)),         # c_pre tile
                pl.BlockSpec((3 * CL, TN), lambda n: (0, n)),     # peephole w tile
                pl.BlockSpec((3 * CL, 1), lambda n: (0, 0)),      # peephole b
            ],
            out_specs=(pl.BlockSpec((CL, TN), lambda n: (0, n)),
                       pl.BlockSpec((CL, TN), lambda n: (0, n))),
        ),
        compiler_params=pltpu.CompilerParams(
            dimension_semantics=("parallel",)),
    )(wT, bconv_c, pT, cT, wp_l, bp_c)

    h_cur = jnp.transpose(h_t.reshape(CL, B, H, W), (1, 0, 2, 3))
    c_cur = jnp.transpose(c_t.reshape(CL, B, H, W), (1, 0, 2, 3))
    return h_cur, c_cur


# --------------------------- pure-JAX reference ---------------------------

def _conv2d_ref(x, w):
    return jax.lax.conv_general_dilated(
        x, w, window_strides=(1, 1), padding='SAME',
        dimension_numbers=('NCHW', 'OIHW', 'NCHW'),
        precision=jax.lax.Precision.HIGHEST)


def conv_lstm_cell_ref(x, h, c, wx, wh, bconv, wp, bp):
    def gate_pre(g):
        return (_conv2d_ref(x, wx[g]) + _conv2d_ref(h, wh[g])
                + bconv[g].reshape(1, -1, 1, 1))
    f = jax.nn.sigmoid(gate_pre(0) + wp[0][None] * c + bp[0].reshape(1, -1, 1, 1))
    i = jax.nn.sigmoid(gate_pre(1) + wp[1][None] * c + bp[1].reshape(1, -1, 1, 1))
    g = jnp.tanh(gate_pre(2))
    c_cur = f * c + i * g
    o = jax.nn.sigmoid(gate_pre(3) + wp[2][None] * c_cur + bp[2].reshape(1, -1, 1, 1))
    h_cur = o * jnp.tanh(c_cur)
    return h_cur, c_cur


# --------------------------------- main -----------------------------------

if __name__ == "__main__":
    B, CIN, H, W, CL = 2, 4, 16, 16, 16   # lstm_channels default = 16

    key = jax.random.PRNGKey(0)
    keys = jax.random.split(key, 8)

    # Inputs / state (NCHW, like the PyTorch module).
    x = jax.random.normal(keys[0], (B, CIN, H, W), jnp.float32)
    h0 = jax.random.normal(keys[1], (B, CL, H, W), jnp.float32)
    c0 = jax.random.normal(keys[2], (B, CL, H, W), jnp.float32)

    # Deterministic parameter init (shapes from the module's __init__).
    # Conv weights per gate (f, i, c, o): conv_x OIHW [CL,CIN,3,3] and
    # conv_h OIHW [CL,CL,3,3]; biases of conv_x and conv_h are summed into bconv.
    wx = jax.random.normal(keys[3], (4, CL, CIN, 3, 3), jnp.float32) * 0.1
    wh = jax.random.normal(keys[4], (4, CL, CL, 3, 3), jnp.float32) * 0.1
    bconv = jax.random.normal(keys[5], (4, CL), jnp.float32) * 0.1
    # Peephole params for f, i, o gates: w is kaiming_normal (fan_in = H*W).
    wp = jax.random.normal(keys[6], (3, CL, H, W), jnp.float32) * jnp.sqrt(2.0 / (H * W))
    # TODO(synk): torch leaves the peephole bias uninitialized; use small random values.
    bp = jax.random.normal(keys[7], (3, CL), jnp.float32) * 0.1

    h_cur, c_cur = conv_lstm_cell(x, h0, c0, wx, wh, bconv, wp, bp)
    jax.block_until_ready((h_cur, c_cur))

    h_ref, c_ref = conv_lstm_cell_ref(x, h0, c0, wx, wh, bconv, wp, bp)
    assert h_cur.shape == (B, CL, H, W) and c_cur.shape == (B, CL, H, W)
    assert jnp.allclose(h_cur, h_ref, rtol=1e-3, atol=1e-3)
    assert jnp.allclose(c_cur, c_ref, rtol=1e-3, atol=1e-3)

    print("KERNEL_OK")
</pallas_src>

<mosaic_0001>
module attributes {stable_mosaic.version = 11 : i64} {
  func.func @_convlstm_kernel(%arg0: i32, %arg1: memref<64x180xf32, #tpu.memory_space<vmem>>, %arg2: memref<64x1xf32, #tpu.memory_space<vmem>>, %arg3: memref<180x256xf32, #tpu.memory_space<vmem>>, %arg4: memref<16x256xf32, #tpu.memory_space<vmem>>, %arg5: memref<48x256xf32, #tpu.memory_space<vmem>>, %arg6: memref<48x1xf32, #tpu.memory_space<vmem>>, %arg7: memref<16x256xf32, #tpu.memory_space<vmem>>, %arg8: memref<16x256xf32, #tpu.memory_space<vmem>>) attributes {dimension_semantics = [#tpu.dimension_semantics<parallel>], iteration_bounds = array<i64: 2>, scalar_prefetch = 0 : i64, scratch_operands = 0 : i64, tpu.core_type = #tpu.core_type<tc>, window_params = [{pipeline_mode = #tpu.pipeline_mode<synchronous>, transform_indices = @transform_0, window_bounds = array<i64: 64, 180>}, {pipeline_mode = #tpu.pipeline_mode<synchronous>, transform_indices = @transform_1, window_bounds = array<i64: 64, 1>}, {transform_indices = @transform_2, window_bounds = array<i64: 180, 256>}, {transform_indices = @transform_3, window_bounds = array<i64: 16, 256>}, {transform_indices = @transform_4, window_bounds = array<i64: 48, 256>}, {pipeline_mode = #tpu.pipeline_mode<synchronous>, transform_indices = @transform_5, window_bounds = array<i64: 48, 1>}, {transform_indices = @transform_6, window_bounds = array<i64: 16, 256>}, {transform_indices = @transform_7, window_bounds = array<i64: 16, 256>}]} {
    %c0 = arith.constant 0 : index
    %c0_0 = arith.constant 0 : index
    %0 = vector.load %arg1[%c0, %c0_0] : memref<64x180xf32, #tpu.memory_space<vmem>>, vector<64x180xf32>
    %c0_1 = arith.constant 0 : index
    %c0_2 = arith.constant 0 : index
    %1 = vector.load %arg3[%c0_1, %c0_2] : memref<180x256xf32, #tpu.memory_space<vmem>>, vector<180x256xf32>
    %cst = arith.constant dense<0.000000e+00> : vector<64x256xf32>
    %2 = tpu.matmul %0, %1, %cst {dimension_numbers = #tpu.dot_dimension_numbers<[1], [0], [0], [1], [0, 0, 1, 1], [], []>} : vector<64x180xf32>, vector<180x256xf32>, vector<64x256xf32> -> vector<64x256xf32>
    %c0_3 = arith.constant 0 : index
    %c0_4 = arith.constant 0 : index
    %3 = vector.load %arg2[%c0_3, %c0_4] : memref<64x1xf32, #tpu.memory_space<vmem>>, vector<64x1xf32>
    %4 = vector.broadcast %3 : vector<64x1xf32> to vector<64x256xf32>
    %5 = arith.addf %2, %4 : vector<64x256xf32>
    %c0_5 = arith.constant 0 : index
    %c0_6 = arith.constant 0 : index
    %6 = vector.load %arg4[%c0_5, %c0_6] : memref<16x256xf32, #tpu.memory_space<vmem>>, vector<16x256xf32>
    %c0_7 = arith.constant 0 : index
    %c0_8 = arith.constant 0 : index
    %7 = vector.load %arg5[%c0_7, %c0_8] : memref<48x256xf32, #tpu.memory_space<vmem>>, vector<48x256xf32>
    %c0_9 = arith.constant 0 : index
    %c0_10 = arith.constant 0 : index
    %8 = vector.load %arg6[%c0_9, %c0_10] : memref<48x1xf32, #tpu.memory_space<vmem>>, vector<48x1xf32>
    %9 = vector.extract_strided_slice %5 {offsets = [0, 0], sizes = [16, 256], strides = [1, 1]} : vector<64x256xf32> to vector<16x256xf32>
    %10 = vector.extract_strided_slice %7 {offsets = [0, 0], sizes = [16, 256], strides = [1, 1]} : vector<48x256xf32> to vector<16x256xf32>
    %11 = arith.mulf %10, %6 : vector<16x256xf32>
    %12 = arith.addf %9, %11 : vector<16x256xf32>
    %13 = vector.extract_strided_slice %8 {offsets = [0, 0], sizes = [16, 1], strides = [1, 1]} : vector<48x1xf32> to vector<16x1xf32>
    %14 = vector.broadcast %13 : vector<16x1xf32> to vector<16x256xf32>
    %15 = arith.addf %12, %14 : vector<16x256xf32>
    %16 = arith.negf %15 : vector<16x256xf32>
    %17 = math.exp %16 : vector<16x256xf32>
    %cst_11 = arith.constant 1.000000e+00 : f32
    %18 = vector.broadcast %cst_11 : f32 to vector<16x256xf32>
    %19 = arith.addf %18, %17 : vector<16x256xf32>
    %20 = arith.divf %18, %19 : vector<16x256xf32>
    %21 = vector.extract_strided_slice %5 {offsets = [16, 0], sizes = [16, 256], strides = [1, 1]} : vector<64x256xf32> to vector<16x256xf32>
    %22 = vector.extract_strided_slice %7 {offsets = [16, 0], sizes = [16, 256], strides = [1, 1]} : vector<48x256xf32> to vector<16x256xf32>
    %23 = arith.mulf %22, %6 : vector<16x256xf32>
    %24 = arith.addf %21, %23 : vector<16x256xf32>
    %25 = vector.extract_strided_slice %8 {offsets = [16, 0], sizes = [16, 1], strides = [1, 1]} : vector<48x1xf32> to vector<16x1xf32>
    %26 = vector.broadcast %25 : vector<16x1xf32> to vector<16x256xf32>
    %27 = arith.addf %24, %26 : vector<16x256xf32>
    %28 = arith.negf %27 : vector<16x256xf32>
    %29 = math.exp %28 : vector<16x256xf32>
    %cst_12 = arith.constant 1.000000e+00 : f32
    %30 = vector.broadcast %cst_12 : f32 to vector<16x256xf32>
    %31 = arith.addf %30, %29 : vector<16x256xf32>
    %32 = arith.divf %30, %31 : vector<16x256xf32>
    %33 = vector.extract_strided_slice %5 {offsets = [32, 0], sizes = [16, 256], strides = [1, 1]} : vector<64x256xf32> to vector<16x256xf32>
    %34 = math.tanh %33 : vector<16x256xf32>
    %35 = arith.mulf %20, %6 : vector<16x256xf32>
    %36 = arith.mulf %32, %34 : vector<16x256xf32>
    %37 = arith.addf %35, %36 : vector<16x256xf32>
    %38 = vector.extract_strided_slice %5 {offsets = [48, 0], sizes = [16, 256], strides = [1, 1]} : vector<64x256xf32> to vector<16x256xf32>
    %39 = vector.extract_strided_slice %7 {offsets = [32, 0], sizes = [16, 256], strides = [1, 1]} : vector<48x256xf32> to vector<16x256xf32>
    %40 = arith.mulf %39, %37 : vector<16x256xf32>
    %41 = arith.addf %38, %40 : vector<16x256xf32>
    %42 = vector.extract_strided_slice %8 {offsets = [32, 0], sizes = [16, 1], strides = [1, 1]} : vector<48x1xf32> to vector<16x1xf32>
    %43 = vector.broadcast %42 : vector<16x1xf32> to vector<16x256xf32>
    %44 = arith.addf %41, %43 : vector<16x256xf32>
    %45 = arith.negf %44 : vector<16x256xf32>
    %46 = math.exp %45 : vector<16x256xf32>
    %cst_13 = arith.constant 1.000000e+00 : f32
    %47 = vector.broadcast %cst_13 : f32 to vector<16x256xf32>
    %48 = arith.addf %47, %46 : vector<16x256xf32>
    %49 = arith.divf %47, %48 : vector<16x256xf32>
    %50 = math.tanh %37 : vector<16x256xf32>
    %51 = arith.mulf %49, %50 : vector<16x256xf32>
    %c0_14 = arith.constant 0 : index
    %c0_15 = arith.constant 0 : index
    %52 = vector.load %arg7[%c0_14, %c0_15] : memref<16x256xf32, #tpu.memory_space<vmem>>, vector<16x256xf32>
    tpu.vector_store %arg7[%c0_14, %c0_15], %51 {strides = array<i32>} : memref<16x256xf32, #tpu.memory_space<vmem>>, vector<16x256xf32>,
    %c0_16 = arith.constant 0 : index
    %c0_17 = arith.constant 0 : index
    %53 = vector.load %arg8[%c0_16, %c0_17] : memref<16x256xf32, #tpu.memory_space<vmem>>, vector<16x256xf32>
    tpu.vector_store %arg8[%c0_16, %c0_17], %37 {strides = array<i32>} : memref<16x256xf32, #tpu.memory_space<vmem>>, vector<16x256xf32>,
    return
  }
  func.func @transform_0(%arg0: i32) -> (i32, i32) {
    %c0_i32 = arith.constant 0 : i32
    %c0_i32_0 = arith.constant 0 : i32
    %c0_i32_1 = arith.constant 0 : i32
    return %c0_i32, %c0_i32_0 : i32, i32
  }
  func.func @transform_1(%arg0: i32) -> (i32, i32) {
    %c0_i32 = arith.constant 0 : i32
    %c0_i32_0 = arith.constant 0 : i32
    %c0_i32_1 = arith.constant 0 : i32
    return %c0_i32, %c0_i32_0 : i32, i32
  }
  func.func @transform_2(%arg0: i32) -> (i32, i32) {
    %c0_i32 = arith.constant 0 : i32
    %c0_i32_0 = arith.constant 0 : i32
    return %c0_i32, %arg0 : i32, i32
  }
  func.func @transform_3(%arg0: i32) -> (i32, i32) {
    %c0_i32 = arith.constant 0 : i32
    %c0_i32_0 = arith.constant 0 : i32
    return %c0_i32, %arg0 : i32, i32
  }
  func.func @transform_4(%arg0: i32) -> (i32, i32) {
    %c0_i32 = arith.constant 0 : i32
    %c0_i32_0 = arith.constant 0 : i32
    return %c0_i32, %arg0 : i32, i32
  }
  func.func @transform_5(%arg0: i32) -> (i32, i32) {
    %c0_i32 = arith.constant 0 : i32
    %c0_i32_0 = arith.constant 0 : i32
    %c0_i32_1 = arith.constant 0 : i32
    return %c0_i32, %c0_i32_0 : i32, i32
  }
  func.func @transform_6(%arg0: i32) -> (i32, i32) {
    %c0_i32 = arith.constant 0 : i32
    %c0_i32_0 = arith.constant 0 : i32
    return %c0_i32, %arg0 : i32, i32
  }
  func.func @transform_7(%arg0: i32) -> (i32, i32) {
    %c0_i32 = arith.constant 0 : i32
    %c0_i32_0 = arith.constant 0 : i32
    return %c0_i32, %arg0 : i32, i32
  }
}

</mosaic_0001>

<llo_original>
// kernel: tpu_custom_call.1
$region0: #{tpu_custom_call.1}
  #allocation0 [shape = 'u32[]', space=smem, size = 0x4, offset = 0x4, fixed_abs, tag = 'smem constant byte address 0x4 - core index']
  #allocation1 [shape = 'u32[144,128]{1,0:T(1,128)}', space=vmem, size = 0x12000, scoped, tag = 'internal scratch']
  %s0 = inlined_call_operand.hbm [shape: f32[64,180], index: 0, kind: input, shape index: {}]
  %s1 = inlined_call_operand.vmem [shape: f32[64,1], index: 1, kind: input, shape index: {}]
  %s2 = inlined_call_operand.hbm [shape: f32[180,512], index: 2, kind: input, shape index: {}]
  %s3 = inlined_call_operand.vmem [shape: f32[16,512], index: 3, kind: input, shape index: {}]
  %s4 = inlined_call_operand.hbm [shape: f32[48,512], index: 4, kind: input, shape index: {}]
  %s5 = inlined_call_operand.vmem [shape: f32[48,1], index: 5, kind: input, shape index: {}]
  %s6 = inlined_call_operand.hbm [shape: f32[16,512], index: 6, kind: output, shape index: {0}]
  %s7 = inlined_call_operand.hbm [shape: f32[16,512], index: 7, kind: output, shape index: {1}]
  %8 = xla_tuple %s6, %s7
  %s9 = sld [smem:[#allocation0]]
  $region100: #{tpu_custom_call.1} parent=0
    _
  %s11 = ssub.s32 1, %s9
  %s12 = scalar_select 0, %s11, %s9
  $region1: #{tpu_custom_call.1} parent=0
    #allocation2 [shape = 'u8[65536]{0}', space=vmem, size = 0x10000, scoped, tag = 'input window, operand 0, single buffered']
    #allocation3 [shape = 's32[2]{0}', space=sflag, size = 0x8, scoped, tag = 'scoped memory for tpu_custom_call.1']
    #allocation4 [shape = 's32[2]{0}', space=sflag, size = 0x8, scoped, tag = 'scoped memory for tpu_custom_call.1']
    #allocation5 [shape = 'u8[376832]{0}', space=vmem, size = 0x5c000, scoped, tag = 'input window, operand 2']
    #allocation6 [shape = 's32[2]{0}', space=sflag, size = 0x8, scoped, tag = 'scoped memory for tpu_custom_call.1']
    #allocation7 [shape = 'u8[32768]{0}', space=vmem, size = 0x8000, scoped, tag = 'input window, operand 3']
    #allocation8 [shape = 'u8[98304]{0}', space=vmem, size = 0x18000, scoped, tag = 'input window, operand 4']
    #allocation9 [shape = 'u8[32768]{0}', space=vmem, size = 0x8000, scoped, tag = 'output window, operand 0']
    #allocation10 [shape = 'u8[32768]{0}', space=vmem, size = 0x8000, scoped, tag = 'output window, operand 1']
    #allocation11 [shape = 's32[2]{0}', space=sflag, size = 0x8, scoped, tag = 'scoped memory for tpu_custom_call.1']
    %13 = vsyncpa [#allocation3], 0
    %14 = vsyncpa [#allocation6], 0
    %s15 = scalar_lea.sflag [#allocation6], 1
    %16 = vsyncpa %s15, 0
    %17 = vsyncpa [#allocation4], 0
    %s18 = scalar_lea.sflag [#allocation4], 1
    %19 = vsyncpa %s18, 0
    %20 = vsyncpa [#allocation11], 0
    %s21 = scalar_lea.sflag [#allocation11], 1
    %22 = vsyncpa %s21, 0
    loop: start=0, step=1, limit=4
    $region2: #{tpu_custom_call.1} parent=1 // loop_pre_header
      _
    $region3: #{tpu_custom_call.1} parent=1 // loop_header
      %s24 = sphi 0, %s28
      %p25 = scmp.ge.s32.totalorder %s24, 4
      %s32 = sphi 0, %s32
      %s34 = sphi 0, %s32
      %s35 = sphi 0, %s34
      %s49 = sphi 0, %s35
      %s53 = sphi 0, %s53
      %s55 = sphi 0, %s53
      %s56 = sphi 0, %s55
      %s70 = sphi 0, %s56
      %s76 = sphi 0, %s78
      %s79 = sphi 0, %s76
      %s80 = sphi 0, %s79
      %s96 = sphi 0, %s80
      %s102 = sphi 0, %s104
      %s105 = sphi 0, %s102
      %s106 = sphi 0, %s105
      %s122 = sphi 0, %s106
      %s128 = sphi 0, %s130
      %s131 = sphi 0, %s128
      %s132 = sphi 0, %s131
      %s148 = sphi 0, %s132
      %s152 = sphi 0, %s152
      %s154 = sphi 0, %s152
      %s155 = sphi 0, %s154
      %s169 = sphi 0, %s155
      %s175 = sphi 0, %s177
      %s178 = sphi 0, %s175
      %s179 = sphi 0, %s178
      %s195 = sphi 0, %s179
      %s201 = sphi 0, %s203
      %s204 = sphi 0, %s201
      %s205 = sphi 0, %s204
      %s221 = sphi 0, %s205
    $region4: #{tpu_custom_call.1} parent=1 // loop_header_branch
      %27 = sbr.rel (%p25) target = $region8
    $region5: #{tpu_custom_call.1} parent=1 // loop_body
      %s29 = ssub.s32 %s24, 1
      %s30 = ssub.s32 %s24, 2
      %s31 = sadd.s32 %s24, 1
      %s33 = sadd.s32 %s32, 1
      %p36 = scmp.eq.s32.totalorder %s24, 1
      %p37 = scmp.ne.s32.totalorder %s32, %s34
      %p38 = scmp.eq.s32.totalorder %s24, 0
      %p39 = por %p37, %p38
      %p40 = scmp.ne.s32.totalorder %s32, %s34
      %p41 = scmp.eq.s32.totalorder %s29, 1
      %p42 = por %p40, %p41
      %p43 = scmp.ne.s32.totalorder %s34, %s35
      %p44 = scmp.eq.s32.totalorder %s29, 0
      %p45 = por %p43, %p44
      %p46 = scmp.ne.s32.totalorder %s34, %s35
      %p47 = scmp.eq.s32.totalorder %s30, 1
      %p48 = por %p46, %p47
      %p50 = scmp.ne.s32.totalorder %s35, %s49
      %p51 = scmp.eq.s32.totalorder %s30, 0
      %p52 = por %p50, %p51
      %s54 = sadd.s32 %s53, 1
      %p57 = scmp.eq.s32.totalorder %s24, 1
      %p58 = scmp.ne.s32.totalorder %s53, %s55
      %p59 = scmp.eq.s32.totalorder %s24, 0
      %p60 = por %p58, %p59
      %p61 = scmp.ne.s32.totalorder %s53, %s55
      %p62 = scmp.eq.s32.totalorder %s29, 1
      %p63 = por %p61, %p62
      %p64 = scmp.ne.s32.totalorder %s55, %s56
      %p65 = scmp.eq.s32.totalorder %s29, 0
      %p66 = por %p64, %p65
      %p67 = scmp.ne.s32.totalorder %s55, %s56
      %p68 = scmp.eq.s32.totalorder %s30, 1
      %p69 = por %p67, %p68
      %p71 = scmp.ne.s32.totalorder %s56, %s70
      %p72 = scmp.eq.s32.totalorder %s30, 0
      %p73 = por %p71, %p72
      %s74 = ssub.s32 %s24, %s31
      %p75 = scmp.eq.s32.totalorder %s74, 0
      %s77 = sadd.s32 %s76, 1
      %s78 = scalar_select %p75, %s76, %s77
      %p81 = pneg %p75
      %p82 = scmp.eq.s32.totalorder %s24, 1
      %p83 = por %p81, %p82
      %p84 = scmp.ne.s32.totalorder %s76, %s79
      %p85 = scmp.eq.s32.totalorder %s24, 0
      %p86 = por %p84, %p85
      %p87 = scmp.ne.s32.totalorder %s76, %s79
      %p88 = scmp.eq.s32.totalorder %s29, 1
      %p89 = por %p87, %p88
      %p90 = scmp.ne.s32.totalorder %s79, %s80
      %p91 = scmp.eq.s32.totalorder %s29, 0
      %p92 = por %p90, %p91
      %p93 = scmp.ne.s32.totalorder %s79, %s80
      %p94 = scmp.eq.s32.totalorder %s30, 1
      %p95 = por %p93, %p94
      %p97 = scmp.ne.s32.totalorder %s80, %s96
      %p98 = scmp.eq.s32.totalorder %s30, 0
      %p99 = por %p97, %p98
      %s100 = ssub.s32 %s24, %s31
      %p101 = scmp.eq.s32.totalorder %s100, 0
      %s103 = sadd.s32 %s102, 1
      %s104 = scalar_select %p101, %s102, %s103
      %p107 = pneg %p101
      %p108 = scmp.eq.s32.totalorder %s24, 1
      %p109 = por %p107, %p108
      %p110 = scmp.ne.s32.totalorder %s102, %s105
      %p111 = scmp.eq.s32.totalorder %s24, 0
      %p112 = por %p110, %p111
      %p113 = scmp.ne.s32.totalorder %s102, %s105
      %p114 = scmp.eq.s32.totalorder %s29, 1
      %p115 = por %p113, %p114
      %p116 = scmp.ne.s32.totalorder %s105, %s106
      %p117 = scmp.eq.s32.totalorder %s29, 0
      %p118 = por %p116, %p117
      %p119 = scmp.ne.s32.totalorder %s105, %s106
      %p120 = scmp.eq.s32.totalorder %s30, 1
      %p121 = por %p119, %p120
      %p123 = scmp.ne.s32.totalorder %s106, %s122
      %p124 = scmp.eq.s32.totalorder %s30, 0
      %p125 = por %p123, %p124
      %s126 = ssub.s32 %s24, %s31
      %p127 = scmp.eq.s32.totalorder %s126, 0
      %s129 = sadd.s32 %s128, 1
      %s130 = scalar_select %p127, %s128, %s129
      %p133 = pneg %p127
      %p134 = scmp.eq.s32.totalorder %s24, 1
      %p135 = por %p133, %p134
      %p136 = scmp.ne.s32.totalorder %s128, %s131
      %p137 = scmp.eq.s32.totalorder %s24, 0
      %p138 = por %p136, %p137
      %p139 = scmp.ne.s32.totalorder %s128, %s131
      %p140 = scmp.eq.s32.totalorder %s29, 1
      %p141 = por %p139, %p140
      %p142 = scmp.ne.s32.totalorder %s131, %s132
      %p143 = scmp.eq.s32.totalorder %s29, 0
      %p144 = por %p142, %p143
      %p145 = scmp.ne.s32.totalorder %s131, %s132
      %p146 = scmp.eq.s32.totalorder %s30, 1
      %p147 = por %p145, %p146
      %p149 = scmp.ne.s32.totalorder %s132, %s148
      %p150 = scmp.eq.s32.totalorder %s30, 0
      %p151 = por %p149, %p150
      %s153 = sadd.s32 %s152, 1
      %p156 = scmp.eq.s32.totalorder %s24, 1
      %p157 = scmp.ne.s32.totalorder %s152, %s154
      %p158 = scmp.eq.s32.totalorder %s24, 0
      %p159 = por %p157, %p158
      %p160 = scmp.ne.s32.totalorder %s152, %s154
      %p161 = scmp.eq.s32.totalorder %s29, 1
      %p162 = por %p160, %p161
      %p163 = scmp.ne.s32.totalorder %s154, %s155
      %p164 = scmp.eq.s32.totalorder %s29, 0
      %p165 = por %p163, %p164
      %p166 = scmp.ne.s32.totalorder %s154, %s155
      %p167 = scmp.eq.s32.totalorder %s30, 1
      %p168 = por %p166, %p167
      %p170 = scmp.ne.s32.totalorder %s155, %s169
      %p171 = scmp.eq.s32.totalorder %s30, 0
      %p172 = por %p170, %p171
      %s173 = ssub.s32 %s24, %s31
      %p174 = scmp.eq.s32.totalorder %s173, 0
      %s176 = sadd.s32 %s175, 1
      %s177 = scalar_select %p174, %s175, %s176
      %p180 = pneg %p174
      %p181 = scmp.eq.s32.totalorder %s24, 1
      %p182 = por %p180, %p181
      %p183 = scmp.ne.s32.totalorder %s175, %s178
      %p184 = scmp.eq.s32.totalorder %s24, 0
      %p185 = por %p183, %p184
      %p186 = scmp.ne.s32.totalorder %s175, %s178
      %p187 = scmp.eq.s32.totalorder %s29, 1
      %p188 = por %p186, %p187
      %p189 = scmp.ne.s32.totalorder %s178, %s179
      %p190 = scmp.eq.s32.totalorder %s29, 0
      %p191 = por %p189, %p190
      %p192 = scmp.ne.s32.totalorder %s178, %s179
      %p193 = scmp.eq.s32.totalorder %s30, 1
      %p194 = por %p192, %p193
      %p196 = scmp.ne.s32.totalorder %s179, %s195
      %p197 = scmp.eq.s32.totalorder %s30, 0
      %p198 = por %p196, %p197
      %s199 = ssub.s32 %s24, %s31
      %p200 = scmp.eq.s32.totalorder %s199, 0
      %s202 = sadd.s32 %s201, 1
      %s203 = scalar_select %p200, %s201, %s202
      %p206 = pneg %p200
      %p207 = scmp.eq.s32.totalorder %s24, 1
      %p208 = por %p206, %p207
      %p209 = scmp.ne.s32.totalorder %s201, %s204
      %p210 = scmp.eq.s32.totalorder %s24, 0
      %p211 = por %p209, %p210
      %p212 = scmp.ne.s32.totalorder %s201, %s204
      %p213 = scmp.eq.s32.totalorder %s29, 1
      %p214 = por %p212, %p213
      %p215 = scmp.ne.s32.totalorder %s204, %s205
      %p216 = scmp.eq.s32.totalorder %s29, 0
      %p217 = por %p215, %p216
      %p218 = scmp.ne.s32.totalorder %s204, %s205
      %p219 = scmp.eq.s32.totalorder %s30, 1
      %p220 = por %p218, %p219
      %p222 = scmp.ne.s32.totalorder %s205, %s221
      %p223 = scmp.eq.s32.totalorder %s30, 0
      %p224 = por %p222, %p223
      %p225 = scmp.le.s32.totalorder 1, %s24
      %p226 = scmp.lt.s32.totalorder %s24, 3
      %p227 = pnand %p225, %p226
      %p228 = pneg %p227
      // Predicated region
      $region9: #{tpu_custom_call.1} parent=5 // pred_check
        _
      $region10: #{tpu_custom_call.1} parent=5 // pred_check_branch
        %230 = sbr.rel (%p227) target = $region12
      $region11: #{tpu_custom_call.1} parent=5 // pred_region
        %s231 = ssub.s32 %s24, 1
        // Predicated region
        $region13: #{tpu_custom_call.1} parent=11 // pred_check
          %p232 = pneg %p45
        $region14: #{tpu_custom_call.1} parent=11 // pred_check_branch
          %234 = sbr.rel (%p232) target = $region16
        $region15: #{tpu_custom_call.1} parent=11 // pred_region
          %s236 = ssub.s32 2048, 2048
          %237 = vsyncadd [#allocation3], %s236
          %s238 = sshll.u32 [#allocation2], 4
          %s239 = int_to_ptr.vmem [resolvable:$true] %s238
          %244 = dma.hbm_to_vmem [thread:$0]  %s0, 2048, %s239, [#allocation3], 256, 256, 16
        $region16: #{tpu_custom_call.1} parent=11 // pred_fallthru
          _
        // Predicated region
        $region17: #{tpu_custom_call.1} parent=11 // pred_check
          %p245 = pneg %p66
        $region18: #{tpu_custom_call.1} parent=11 // pred_check_branch
          %247 = sbr.rel (%p245) target = $region20
        $region19: #{tpu_custom_call.1} parent=11 // pred_region
          _
        $region20: #{tpu_custom_call.1} parent=11 // pred_fallthru
          _
        // Predicated region
        $region21: #{tpu_custom_call.1} parent=11 // pred_check
          %p248 = pneg %p165
        $region22: #{tpu_custom_call.1} parent=11 // pred_check_branch
          %250 = sbr.rel (%p248) target = $region24
        $region23: #{tpu_custom_call.1} parent=11 // pred_region
          _
        $region24: #{tpu_custom_call.1} parent=11 // pred_fallthru
          _
      $region12: #{tpu_custom_call.1} parent=5 // pred_fallthru
        _
      %p251 = scmp.lt.s32.totalorder %s24, 2
      // Predicated region
      $region25: #{tpu_custom_call.1} parent=5 // pred_check
        %p252 = pneg %p251
      $region26: #{tpu_custom_call.1} parent=5 // pred_check_branch
        %254 = sbr.rel (%p252) target = $region28
      $region27: #{tpu_custom_call.1} parent=5 // pred_region
        // Predicated region
        $region29: #{tpu_custom_call.1} parent=27 // pred_check
          %p255 = pneg %p86
        $region30: #{tpu_custom_call.1} parent=27 // pred_check_branch
          %257 = sbr.rel (%p255) target = $region32
        $region31: #{tpu_custom_call.1} parent=27 // pred_region
          %s258 = sand.u32 %s24, 1
          %s259 = scalar_lea.sflag [#allocation6], %s258
          %s260 = sand.u32 %s76, 1
          %s261 = smul.addr %s260, 368
          %s262 = scalar_lea.vmem [#allocation5], %s261
          %s263 = smul.u32 2, %s24
          %s265 = ssub.s32 5888, 5888
          %266 = vsyncadd %s259, %s265
          %s267 = smul.addr %s263, 128
          %s268 = scalar_lea.hbm %s2, %s267
          %s269 = sshll.u32 %s262, 4
          %s270 = int_to_ptr.vmem [resolvable:$true] %s269
          %275 = dma.hbm_to_vmem [thread:$0]  %s268, 5888, %s270, %s259, 512, 256, 16
        $region32: #{tpu_custom_call.1} parent=27 // pred_fallthru
          _
        // Predicated region
        $region33: #{tpu_custom_call.1} parent=27 // pred_check
          %p276 = pneg %p112
        $region34: #{tpu_custom_call.1} parent=27 // pred_check_branch
          %278 = sbr.rel (%p276) target = $region36
        $region35: #{tpu_custom_call.1} parent=27 // pred_region
          %s279 = sand.u32 %s102, 1
          %s280 = sand.u32 %s102, 1
          %s281 = smul.addr %s280, 32
          %s282 = scalar_lea.vmem [#allocation7], %s281
          %s283 = smul.u32 2, %s24
          %s284 = smul.addr %s283, 8
          %s285 = scalar_lea.vmem %s3, %s284
          // Predicated region
          $region37: #{tpu_custom_call.1} parent=35 // pred_check
            _
          $region38: #{tpu_custom_call.1} parent=35 // pred_check_branch
            %287 = sbr.rel (0) target = $region40
          $region39: #{tpu_custom_call.1} parent=35 // pred_region
            // Predicated region
            $region41: #{tpu_custom_call.1} parent=39 // pred_check
              _
            $region42: #{tpu_custom_call.1} parent=39 // pred_check_branch
              %289 = sbr.rel (0) target = $region44
            $region43: #{tpu_custom_call.1} parent=39 // pred_region
              loop: start=0, step=1, limit=1
              $region45: #{tpu_custom_call.1} parent=43 // loop_pre_header
                _
              $region46: #{tpu_custom_call.1} parent=43 // loop_header
                %s291 = sphi 0, %s295
                %p292 = scmp.ge.s32.totalorder %s291, 1
                %s296 = sphi %s285, %s285
                %s297 = sphi %s282, %s282
              $region47: #{tpu_custom_call.1} parent=43 // loop_header_branch
                %294 = sbr.rel (%p292) target = $region51
              $region48: #{tpu_custom_call.1} parent=43 // loop_body
                %v298 = vld [vmem:[%s296] sm:$0xff]
                %299 = vst [vmem:[%s297] sm:$0xff] %v298
                %v300 = vld [vmem:[%s296 + $0x8] sm:$0xff]
                %301 = vst [vmem:[%s297 + $0x8] sm:$0xff] %v300
                %v302 = vld [vmem:[%s296 + $0x20] sm:$0xff]
                %303 = vst [vmem:[%s297 + $0x10] sm:$0xff] %v302
                %v304 = vld [vmem:[%s296 + $0x28] sm:$0xff]
                %305 = vst [vmem:[%s297 + $0x18] sm:$0xff] %v304
              $region49: #{tpu_custom_call.1} parent=43 // loop_footer
                %s295 = sadd.s32 1, %s291
              $region50: #{tpu_custom_call.1} parent=43 // loop_footer_branch
                %290 = sbr.rel target = $region46
              $region51: #{tpu_custom_call.1} parent=43 // loop_exit
                _
            $region44: #{tpu_custom_call.1} parent=39 // pred_fallthru
              _
            // Predicated region
            $region52: #{tpu_custom_call.1} parent=39 // pred_check
              _
            $region53: #{tpu_custom_call.1} parent=39 // pred_check_branch
              %307 = sbr.rel target = $region55
            $region54: #{tpu_custom_call.1} parent=39 // pred_region
              _
            $region55: #{tpu_custom_call.1} parent=39 // pred_fallthru
              _
          $region40: #{tpu_custom_call.1} parent=35 // pred_fallthru
            _
          %308 = vnop
        $region36: #{tpu_custom_call.1} parent=27 // pred_fallthru
          _
        // Predicated region
        $region56: #{tpu_custom_call.1} parent=27 // pred_check
          %p309 = pneg %p138
        $region57: #{tpu_custom_call.1} parent=27 // pred_check_branch
          %311 = sbr.rel (%p309) target = $region59
        $region58: #{tpu_custom_call.1} parent=27 // pred_region
          %s312 = sand.u32 %s24, 1
          %s313 = scalar_lea.sflag [#allocation6], %s312
          %s314 = sand.u32 %s128, 1
          %s315 = smul.addr %s314, 96
          %s316 = scalar_lea.vmem [#allocation8], %s315
          %s317 = smul.u32 2, %s24
          %s319 = ssub.s32 1536, 1536
          %320 = vsyncadd %s313, %s319
          %s321 = smul.addr %s317, 128
          %s322 = scalar_lea.hbm %s4, %s321
          %s323 = sshll.u32 %s316, 4
          %s324 = int_to_ptr.vmem [resolvable:$true] %s323
          %329 = dma.hbm_to_vmem [thread:$0]  %s322, 1536, %s324, %s313, 512, 256, 16
        $region59: #{tpu_custom_call.1} parent=27 // pred_fallthru
          _
      $region28: #{tpu_custom_call.1} parent=5 // pred_fallthru
        _
      %p330 = scmp.le.s32.totalorder 1, %s24
      %p331 = scmp.lt.s32.totalorder %s24, 3
      %p332 = pnand %p330, %p331
      %p333 = pneg %p332
      // Predicated region
      $region60: #{tpu_custom_call.1} parent=5 // pred_check
        _
      $region61: #{tpu_custom_call.1} parent=5 // pred_check_branch
        %335 = sbr.rel (%p332) target = $region63
      $region62: #{tpu_custom_call.1} parent=5 // pred_region
        %s336 = ssub.s32 %s24, 1
        // Predicated region
        $region64: #{tpu_custom_call.1} parent=62 // pred_check
          %p337 = pneg %p45
        $region65: #{tpu_custom_call.1} parent=62 // pred_check_branch
          %339 = sbr.rel (%p337) target = $region67
        $region66: #{tpu_custom_call.1} parent=62 // pred_region
          %340 = dma.done [#allocation3], 2048
        $region67: #{tpu_custom_call.1} parent=62 // pred_fallthru
          _
        %s341 = sand.u32 %s29, 1
        %s342 = scalar_lea.sflag [#allocation6], %s341
        %s343 = sand.u32 %s79, 1
        %s344 = smul.addr %s343, 368
        %s345 = scalar_lea.vmem [#allocation5], %s344
        // Predicated region
        $region68: #{tpu_custom_call.1} parent=62 // pred_check
          %p346 = pneg %p92
        $region69: #{tpu_custom_call.1} parent=62 // pred_check_branch
          %348 = sbr.rel (%p346) target = $region71
        $region70: #{tpu_custom_call.1} parent=62 // pred_region
          %349 = dma.done %s342, 5888
        $region71: #{tpu_custom_call.1} parent=62 // pred_fallthru
          _
        %s350 = sand.u32 %s105, 1
        %s351 = sand.u32 %s105, 1
        %s352 = smul.addr %s351, 32
        %s353 = scalar_lea.vmem [#allocation7], %s352
        // Predicated region
        $region72: #{tpu_custom_call.1} parent=62 // pred_check
          %p354 = pneg %p118
        $region73: #{tpu_custom_call.1} parent=62 // pred_check_branch
          %356 = sbr.rel (%p354) target = $region75
        $region74: #{tpu_custom_call.1} parent=62 // pred_region
          _
        $region75: #{tpu_custom_call.1} parent=62 // pred_fallthru
          _
        %s357 = sand.u32 %s29, 1
        %s358 = scalar_lea.sflag [#allocation6], %s357
        %s359 = sand.u32 %s131, 1
        %s360 = smul.addr %s359, 96
        %s361 = scalar_lea.vmem [#allocation8], %s360
        // Predicated region
        $region76: #{tpu_custom_call.1} parent=62 // pred_check
          %p362 = pneg %p144
        $region77: #{tpu_custom_call.1} parent=62 // pred_check_branch
          %364 = sbr.rel (%p362) target = $region79
        $region78: #{tpu_custom_call.1} parent=62 // pred_region
          %365 = dma.done %s358, 1536
        $region79: #{tpu_custom_call.1} parent=62 // pred_fallthru
          _
        %p366 = pneg %p45
        %p367 = pneg %p42
        %p368 = pneg %p66
        %p369 = pneg %p63
        %s370 = sand.u32 %s29, 1
        %s371 = scalar_lea.sflag [#allocation6], %s370
        %s372 = sand.u32 %s79, 1
        %s373 = smul.addr %s372, 368
        %s374 = scalar_lea.vmem [#allocation5], %s373
        %p375 = pneg %p92
        %p376 = pneg %p89
        %s377 = sand.u32 %s105, 1
        %s378 = sand.u32 %s105, 1
        %s379 = smul.addr %s378, 32
        %s380 = scalar_lea.vmem [#allocation7], %s379
        %p381 = pneg %p118
        %p382 = pneg %p115
        %s383 = sand.u32 %s29, 1
        %s384 = scalar_lea.sflag [#allocation6], %s383
        %s385 = sand.u32 %s131, 1
        %s386 = smul.addr %s385, 96
        %s387 = scalar_lea.vmem [#allocation8], %s386
        %p388 = pneg %p144
        %p389 = pneg %p141
        %p390 = pneg %p165
        %p391 = pneg %p162
        %p392 = pneg %p191
        %p393 = pneg %p188
        %s394 = sand.u32 %s178, 1
        %s395 = scalar_lea.sflag [#allocation4], %s394
        %s396 = sand.u32 %s178, 1
        %s397 = smul.addr %s396, 32
        %s398 = scalar_lea.vmem [#allocation9], %s397
        %p399 = pneg %p217
        %p400 = pneg %p214
        %s401 = sand.u32 %s204, 1
        %s402 = scalar_lea.sflag [#allocation11], %s401
        %s403 = sand.u32 %s204, 1
        %s404 = smul.addr %s403, 32
        %s405 = scalar_lea.vmem [#allocation10], %s404
        %s406 = smul.u32 2, %s29
        %s407 = smul.u32 2, %s29
        %s408 = smul.u32 2, %s29
        %s409 = smul.u32 2, %s29
        %s410 = smul.u32 2, %s29
        %v411 = vld [vmem:[#allocation2] sm:$0xff]
        %v412 = vld [vmem:[#allocation2 + $0x8] sm:$0xff]
        %v413 = vld [vmem:[#allocation2 + $0x10] sm:$0xff]
        %v414 = vld [vmem:[#allocation2 + $0x18] sm:$0xff]
        %v415 = vld [vmem:[#allocation2 + $0x20] sm:$0xff]
        %v416 = vld [vmem:[#allocation2 + $0x28] sm:$0xff]
        %v417 = vld [vmem:[#allocation2 + $0x30] sm:$0xff]
        %v418 = vld [vmem:[#allocation2 + $0x38] sm:$0xff]
        %v419 = vld [vmem:[#allocation2 + $0x40] sm:$0xff]
        %v420 = vld [vmem:[#allocation2 + $0x48] sm:$0xff]
        %v421 = vld [vmem:[#allocation2 + $0x50] sm:$0xff]
        %v422 = vld [vmem:[#allocation2 + $0x58] sm:$0xff]
        %v423 = vld [vmem:[#allocation2 + $0x60] sm:$0xff]
        %v424 = vld [vmem:[#allocation2 + $0x68] sm:$0xff]
        %v425 = vld [vmem:[#allocation2 + $0x70] sm:$0xff]
        %v426 = vld [vmem:[#allocation2 + $0x78] sm:$0xff]
        %v427 = vld [vmem:[%s345] sm:$0xff]
        %v428 = vld [vmem:[%s345 + $0x8] sm:$0xff]
        %v429 = vld [vmem:[%s345 + $0x10] sm:$0xff]
        %v430 = vld [vmem:[%s345 + $0x18] sm:$0xff]
        %v431 = vld [vmem:[%s345 + $0x20] sm:$0xff]
        %v432 = vld [vmem:[%s345 + $0x28] sm:$0xff]
        %v433 = vld [vmem:[%s345 + $0x30] sm:$0xff]
        %v434 = vld [vmem:[%s345 + $0x38] sm:$0xff]
        %v435 = vld [vmem:[%s345 + $0x40] sm:$0xff]
        %v436 = vld [vmem:[%s345 + $0x48] sm:$0xff]
        %v437 = vld [vmem:[%s345 + $0x50] sm:$0xff]
        %v438 = vld [vmem:[%s345 + $0x58] sm:$0xff]
        %v439 = vld [vmem:[%s345 + $0x60] sm:$0xff]
        %v440 = vld [vmem:[%s345 + $0x68] sm:$0xff]
        %v441 = vld [vmem:[%s345 + $0x70] sm:$0xff]
        %v442 = vld [vmem:[%s345 + $0x78] sm:$0xff]
        %v443 = vld [vmem:[%s345 + $0x80] sm:$0xff]
        %v444 = vld [vmem:[%s345 + $0x88] sm:$0xff]
        %v445 = vld [vmem:[%s345 + $0x90] sm:$0xff]
        %v446 = vld [vmem:[%s345 + $0x98] sm:$0xff]
        %v447 = vld [vmem:[%s345 + $0xa0] sm:$0xff]
        %v448 = vld [vmem:[%s345 + $0xa8] sm:$0xff]
        %v449 = vld [vmem:[%s345 + $0xb0] sm:$0xff]
        %v450 = vld [vmem:[%s345 + $0xb8] sm:$0xff]
        %v451 = vld [vmem:[%s345 + $0xc0] sm:$0xff]
        %v452 = vld [vmem:[%s345 + $0xc8] sm:$0xff]
        %v453 = vld [vmem:[%s345 + $0xd0] sm:$0xff]
        %v454 = vld [vmem:[%s345 + $0xd8] sm:$0xff]
        %v455 = vld [vmem:[%s345 + $0xe0] sm:$0xff]
        %v456 = vld [vmem:[%s345 + $0xe8] sm:$0xff]
        %v457 = vld [vmem:[%s345 + $0xf0] sm:$0xff]
        %v458 = vld [vmem:[%s345 + $0xf8] sm:$0xff]
        %v459 = vld [vmem:[%s345 + $0x100] sm:$0xff]
        %v460 = vld [vmem:[%s345 + $0x108] sm:$0xff]
        %v461 = vld [vmem:[%s345 + $0x110] sm:$0xff]
        %v462 = vld [vmem:[%s345 + $0x118] sm:$0xff]
        %v463 = vld [vmem:[%s345 + $0x120] sm:$0xff]
        %v464 = vld [vmem:[%s345 + $0x128] sm:$0xff]
        %v465 = vld [vmem:[%s345 + $0x130] sm:$0xff]
        %v466 = vld [vmem:[%s345 + $0x138] sm:$0xff]
        %v467 = vld [vmem:[%s345 + $0x140] sm:$0xff]
        %v468 = vld [vmem:[%s345 + $0x148] sm:$0xff]
        %v469 = vld [vmem:[%s345 + $0x150] sm:$0xff]
        %v470 = vld [vmem:[%s345 + $0x158] sm:$0xff]
        %v471 = vld [vmem:[%s345 + $0x160] sm:$0xf]
        %v472 = vld [vmem:[%s345 + $0x168] sm:$0xf]
        %v473 = vld [vmem:[%s1] sm:$0xff]
        %v474 = vld [vmem:[%s1 + $0x8] sm:$0xff]
        %v475 = vld [vmem:[%s1 + $0x10] sm:$0xff]
        %v476 = vld [vmem:[%s1 + $0x18] sm:$0xff]
        %v477 = vld [vmem:[%s1 + $0x20] sm:$0xff]
        %v478 = vld [vmem:[%s1 + $0x28] sm:$0xff]
        %v479 = vld [vmem:[%s1 + $0x30] sm:$0xff]
        %v480 = vld [vmem:[%s1 + $0x38] sm:$0xff]
        %482 = vset.pattern.permute.xlu0 0
        %483 = vperm.xlu0 %482, %v473
        %v484 = vpop.permute.xlu0 %483
        %487 = vset.pattern.permute.xlu0 0
        %488 = vperm.xlu0 %487, %v474
        %v489 = vpop.permute.xlu0 %488
        %492 = vset.pattern.permute.xlu0 0
        %493 = vperm.xlu0 %492, %v475
        %v494 = vpop.permute.xlu0 %493
        %497 = vset.pattern.permute.xlu0 0
        %498 = vperm.xlu0 %497, %v476
        %v499 = vpop.permute.xlu0 %498
        %502 = vset.pattern.permute.xlu0 0
        %503 = vperm.xlu0 %502, %v477
        %v504 = vpop.permute.xlu0 %503
        %507 = vset.pattern.permute.xlu0 0
        %508 = vperm.xlu0 %507, %v478
        %v509 = vpop.permute.xlu0 %508
        %512 = vset.pattern.permute.xlu0 0
        %513 = vperm.xlu0 %512, %v479
        %v514 = vpop.permute.xlu0 %513
        %517 = vset.pattern.permute.xlu0 0
        %518 = vperm.xlu0 %517, %v480
        %v519 = vpop.permute.xlu0 %518
        %vm521 = vcmask 424960
        %v523 = vsel %vm521, %v412, 0
        %v526 = vsel %vm521, %v414, 0
        %v529 = vsel %vm521, %v416, 0
        %v532 = vsel %vm521, %v418, 0
        %v535 = vsel %vm521, %v420, 0
        %v538 = vsel %vm521, %v422, 0
        %v541 = vsel %vm521, %v424, 0
        %v544 = vsel %vm521, %v426, 0
        %vm546 = vcmask 1043456
        %v548 = vsel %vm546, %v471, 0
        %v551 = vsel %vm546, %v472, 0
        %553 = vmatprep.subr.mxu0 %v458
        %554 = vmatpush1.msra.mxu0 %v457
        %555 = vmatprep.subr.mxu0 %v456
        %556 = vmatpush1.msra.mxu0 %v455
        %557 = vmatprep.subr.mxu0 %v454
        %558 = vmatpush1.msra.mxu0 %v453
        %559 = vmatprep.subr.mxu0 %v452
        %560 = vmatpush1.msra.mxu0 %v451
        %561 = vmatprep.subr.mxu0 %v450
        %562 = vmatpush1.msra.mxu0 %v449
        %563 = vmatprep.subr.mxu0 %v448
        %564 = vmatpush1.msra.mxu0 %v447
        %565 = vmatprep.subr.mxu0 %v446
        %566 = vmatpush1.msra.mxu0 %v445
        %567 = vmatprep.subr.mxu0 %v444
        %568 = vmatpush1.msra.mxu0 %v443
        %569 = vmatprep.subr.mxu0 %v442
        %570 = vmatpush1.msra.mxu0 %v441
        %571 = vmatprep.subr.mxu0 %v440
        %572 = vmatpush1.msra.mxu0 %v439
        %573 = vmatprep.subr.mxu0 %v438
        %574 = vmatpush1.msra.mxu0 %v437
        %575 = vmatprep.subr.mxu0 %v436
        %576 = vmatpush1.msra.mxu0 %v435
        %577 = vmatprep.subr.mxu0 %v434
        %578 = vmatpush1.msra.mxu0 %v433
        %579 = vmatprep.subr.mxu0 %v432
        %580 = vmatpush1.msra.mxu0 %v431
        %581 = vmatprep.subr.mxu0 %v430
        %582 = vmatpush1.msra.mxu0 %v429
        %583 = vmatprep.subr.mxu0 %v428
        %584 = vmatpush1.msra.mxu0 %v427
        %585 = vmatprep.subr.mxu0 0.0
        %586 = vmatpush2.msra.mxu0 0.0
        %587 = vmatprep.subr.mxu0 0.0
        %588 = vmatpush2.msra.mxu0 0.0
        %589 = vmatprep.subr.mxu0 0.0
        %590 = vmatpush2.msra.mxu0 0.0
        %591 = vmatprep.subr.mxu0 0.0
        %592 = vmatpush2.msra.mxu0 0.0
        %593 = vmatprep.subr.mxu0 0.0
        %594 = vmatpush2.msra.mxu0 0.0
        %595 = vmatprep.subr.mxu0 0.0
        %596 = vmatpush2.msra.mxu0 0.0
        %597 = vmatprep.subr.mxu0 0.0
        %598 = vmatpush2.msra.mxu0 0.0
        %599 = vmatprep.subr.mxu0 0.0
        %600 = vmatpush2.msra.mxu0 0.0
        %601 = vmatprep.subr.mxu0 0.0
        %602 = vmatpush2.msra.mxu0 0.0
        %603 = vmatprep.subr.mxu0 %v551
        %604 = vmatpush2.msra.mxu0 %v548
        %605 = vmatprep.subr.mxu0 %v470
        %606 = vmatpush2.msra.mxu0 %v469
        %607 = vmatprep.subr.mxu0 %v468
        %608 = vmatpush2.msra.mxu0 %v467
        %609 = vmatprep.subr.mxu0 %v466
        %610 = vmatpush2.msra.mxu0 %v465
        %611 = vmatprep.subr.mxu0 %v464
        %612 = vmatpush2.msra.mxu0 %v463
        %613 = vmatprep.subr.mxu0 %v462
        %614 = vmatpush2.msra.mxu0 %v461
        %615 = vmatprep.subr.mxu0 %v460
        %616 = vmatpush2.msra.mxu0 %v459
        %617 = vmatprep.mubr.f32.mxu0 %v523
        %618 = vmatmul.mubr.f32.gmra.mxu0 %v411
        %v619 = vpop.f32.mrf.mxu0
        %v620 = vadd.f32 %v484, %v619
        %v621 = vpop.f32.mrf.mxu0
        %v622 = vadd.f32 %v484, %v621
        %623 = vmatprep.mubr.f32.mxu0 %v526
        %624 = vmatmul.mubr.f32.gmra.mxu0 %v413
        %v625 = vpop.f32.mrf.mxu0
        %v626 = vadd.f32 %v489, %v625
        %v627 = vpop.f32.mrf.mxu0
        %v628 = vadd.f32 %v489, %v627
        %629 = vmatprep.mubr.f32.mxu0 %v529
        %630 = vmatmul.mubr.f32.gmra.mxu0 %v415
        %v631 = vpop.f32.mrf.mxu0
        %v632 = vadd.f32 %v494, %v631
        %v633 = vpop.f32.mrf.mxu0
        %v634 = vadd.f32 %v494, %v633
        %635 = vmatprep.mubr.f32.mxu0 %v532
        %636 = vmatmul.mubr.f32.gmra.mxu0 %v417
        %v637 = vpop.f32.mrf.mxu0
        %v638 = vadd.f32 %v499, %v637
        %v639 = vpop.f32.mrf.mxu0
        %v640 = vadd.f32 %v499, %v639
        %641 = vmatprep.mubr.f32.mxu0 %v535
        %642 = vmatmul.mubr.f32.gmra.mxu0 %v419
        %v643 = vpop.f32.mrf.mxu0
        %v644 = vadd.f32 %v504, %v643
        %v645 = vpop.f32.mrf.mxu0
        %v646 = vadd.f32 %v504, %v645
        %647 = vmatprep.mubr.f32.mxu0 %v538
        %648 = vmatmul.mubr.f32.gmra.mxu0 %v421
        %v649 = vpop.f32.mrf.mxu0
        %v650 = vadd.f32 %v509, %v649
        %v651 = vpop.f32.mrf.mxu0
        %v652 = vadd.f32 %v509, %v651
        %653 = vmatprep.mubr.f32.mxu0 %v541
        %654 = vmatmul.mubr.f32.gmra.mxu0 %v423
        %v655 = vpop.f32.mrf.mxu0
        %v656 = vadd.f32 %v514, %v655
        %v657 = vpop.f32.mrf.mxu0
        %v658 = vadd.f32 %v514, %v657
        %659 = vmatprep.mubr.f32.mxu0 %v544
        %660 = vmatmul.mubr.f32.gmra.mxu0 %v425
        %v661 = vpop.f32.mrf.mxu0
        %v662 = vadd.f32 %v519, %v661
        %v663 = vpop.f32.mrf.mxu0
        %v664 = vadd.f32 %v519, %v663
        %665 = vdwg.mxu0
        %v666 = vld [vmem:[%s353] sm:$0xff]
        %v667 = vld [vmem:[%s353 + $0x8] sm:$0xff]
        %v668 = vld [vmem:[%s353 + $0x10] sm:$0xff]
        %v669 = vld [vmem:[%s353 + $0x18] sm:$0xff]
        %v670 = vld [vmem:[%s361] sm:$0xff]
        %v671 = vld [vmem:[%s361 + $0x8] sm:$0xff]
        %v672 = vld [vmem:[%s361 + $0x10] sm:$0xff]
        %v673 = vld [vmem:[%s361 + $0x18] sm:$0xff]
        %v674 = vld [vmem:[%s361 + $0x20] sm:$0xff]
        %v675 = vld [vmem:[%s361 + $0x28] sm:$0xff]
        %v676 = vld [vmem:[%s361 + $0x30] sm:$0xff]
        %v677 = vld [vmem:[%s361 + $0x38] sm:$0xff]
        %v678 = vld [vmem:[%s361 + $0x40] sm:$0xff]
        %v679 = vld [vmem:[%s361 + $0x48] sm:$0xff]
        %v680 = vld [vmem:[%s361 + $0x50] sm:$0xff]
        %v681 = vld [vmem:[%s361 + $0x58] sm:$0xff]
        %v682 = vld [vmem:[%s5] sm:$0xff]
        %v683 = vld [vmem:[%s5 + $0x8] sm:$0xff]
        %v684 = vld [vmem:[%s5 + $0x10] sm:$0xff]
        %v685 = vld [vmem:[%s5 + $0x18] sm:$0xff]
        %v686 = vld [vmem:[%s5 + $0x20] sm:$0xff]
        %v687 = vld [vmem:[%s5 + $0x28] sm:$0xff]
        %v688 = vmul.f32 %v670, %v666
        %v689 = vmul.f32 %v671, %v667
        %v690 = vmul.f32 %v672, %v668
        %v691 = vmul.f32 %v673, %v669
        %v692 = vadd.f32 %v620, %v688
        %v693 = vadd.f32 %v622, %v689
        %v694 = vadd.f32 %v626, %v690
        %v695 = vadd.f32 %v628, %v691
        %697 = vset.pattern.permute.xlu0 0
        %698 = vperm.xlu0 %697, %v682
        %v699 = vpop.permute.xlu0 %698
        %702 = vset.pattern.permute.xlu0 0
        %703 = vperm.xlu0 %702, %v683
        %v704 = vpop.permute.xlu0 %703
        %v706 = vadd.f32 %v692, %v699
        %v707 = vadd.f32 %v693, %v699
        %v708 = vadd.f32 %v694, %v704
        %v709 = vadd.f32 %v695, %v704
        %v710 = vxor.u32 %v706, 2147483648
        %v711 = vxor.u32 %v707, 2147483648
        %v712 = vxor.u32 %v708, 2147483648
        %v713 = vxor.u32 %v709, 2147483648
        %v714 = vmul.f32 %v710, 1.442695
        %v715 = vpow.pop %v714
        %v716 = vmul.f32 %v711, 1.442695
        %v717 = vpow.pop %v716
        %v718 = vmul.f32 %v712, 1.442695
        %v719 = vpow.pop %v718
        %v720 = vmul.f32 %v713, 1.442695
        %v721 = vpow.pop %v720
        %v722 = vadd.f32 %v715, 1.0
        %v723 = vadd.f32 %v717, 1.0
        %v724 = vadd.f32 %v719, 1.0
        %v725 = vadd.f32 %v721, 1.0
        %v726 = vrcp.pop %v722
        %v727 = vmul.f32 1.0, %v726
        %v728 = vrcp.pop %v723
        %v729 = vmul.f32 1.0, %v728
        %v730 = vrcp.pop %v724
        %v731 = vmul.f32 1.0, %v730
        %v732 = vrcp.pop %v725
        %v733 = vmul.f32 1.0, %v732
        %v734 = vmul.f32 %v674, %v666
        %v735 = vmul.f32 %v675, %v667
        %v736 = vmul.f32 %v676, %v668
        %v737 = vmul.f32 %v677, %v669
        %v738 = vadd.f32 %v632, %v734
        %v739 = vadd.f32 %v634, %v735
        %v740 = vadd.f32 %v638, %v736
        %v741 = vadd.f32 %v640, %v737
        %743 = vset.pattern.permute.xlu0 0
        %744 = vperm.xlu0 %743, %v684
        %v745 = vpop.permute.xlu0 %744
        %748 = vset.pattern.permute.xlu0 0
        %749 = vperm.xlu0 %748, %v685
        %v750 = vpop.permute.xlu0 %749
        %v752 = vadd.f32 %v738, %v745
        %v753 = vadd.f32 %v739, %v745
        %v754 = vadd.f32 %v740, %v750
        %v755 = vadd.f32 %v741, %v750
        %v756 = vxor.u32 %v752, 2147483648
        %v757 = vxor.u32 %v753, 2147483648
        %v758 = vxor.u32 %v754, 2147483648
        %v759 = vxor.u32 %v755, 2147483648
        %v760 = vmul.f32 %v756, 1.442695
        %v761 = vpow.pop %v760
        %v762 = vmul.f32 %v757, 1.442695
        %v763 = vpow.pop %v762
        %v764 = vmul.f32 %v758, 1.442695
        %v765 = vpow.pop %v764
        %v766 = vmul.f32 %v759, 1.442695
        %v767 = vpow.pop %v766
        %v768 = vadd.f32 %v761, 1.0
        %v769 = vadd.f32 %v763, 1.0
        %v770 = vadd.f32 %v765, 1.0
        %v771 = vadd.f32 %v767, 1.0
        %v772 = vrcp.pop %v768
        %v773 = vmul.f32 1.0, %v772
        %v774 = vrcp.pop %v769
        %v775 = vmul.f32 1.0, %v774
        %v776 = vrcp.pop %v770
        %v777 = vmul.f32 1.0, %v776
        %v778 = vrcp.pop %v771
        %v779 = vmul.f32 1.0, %v778
        %v780 = vtanh.pop %v644
        %v781 = vtanh.pop %v646
        %v782 = vtanh.pop %v650
        %v783 = vtanh.pop %v652
        %v784 = vmul.f32 %v727, %v666
        %v785 = vmul.f32 %v729, %v667
        %v786 = vmul.f32 %v731, %v668
        %v787 = vmul.f32 %v733, %v669
        %v788 = vmul.f32 %v773, %v780
        %v789 = vmul.f32 %v775, %v781
        %v790 = vmul.f32 %v777, %v782
        %v791 = vmul.f32 %v779, %v783
        %v792 = vadd.f32 %v784, %v788
        %v793 = vadd.f32 %v785, %v789
        %v794 = vadd.f32 %v786, %v790
        %v795 = vadd.f32 %v787, %v791
        %v796 = vmul.f32 %v678, %v792
        %v797 = vmul.f32 %v679, %v793
        %v798 = vmul.f32 %v680, %v794
        %v799 = vmul.f32 %v681, %v795
        %v800 = vadd.f32 %v656, %v796
        %v801 = vadd.f32 %v658, %v797
        %v802 = vadd.f32 %v662, %v798
        %v803 = vadd.f32 %v664, %v799
        %805 = vset.pattern.permute.xlu0 0
        %806 = vperm.xlu0 %805, %v686
        %v807 = vpop.permute.xlu0 %806
        %810 = vset.pattern.permute.xlu0 0
        %811 = vperm.xlu0 %810, %v687
        %v812 = vpop.permute.xlu0 %811
        %v814 = vadd.f32 %v800, %v807
        %v815 = vadd.f32 %v801, %v807
        %v816 = vadd.f32 %v802, %v812
        %v817 = vadd.f32 %v803, %v812
        %v818 = vxor.u32 %v814, 2147483648
        %v819 = vxor.u32 %v815, 2147483648
        %v820 = vxor.u32 %v816, 2147483648
        %v821 = vxor.u32 %v817, 2147483648
        %v822 = vmul.f32 %v818, 1.442695
        %v823 = vpow.pop %v822
        %v824 = vmul.f32 %v819, 1.442695
        %v825 = vpow.pop %v824
        %v826 = vmul.f32 %v820, 1.442695
        %v827 = vpow.pop %v826
        %v828 = vmul.f32 %v821, 1.442695
        %v829 = vpow.pop %v828
        %v830 = vadd.f32 %v823, 1.0
        %v831 = vadd.f32 %v825, 1.0
        %v832 = vadd.f32 %v827, 1.0
        %v833 = vadd.f32 %v829, 1.0
        %v834 = vrcp.pop %v830
        %v835 = vmul.f32 1.0, %v834
        %v836 = vrcp.pop %v831
        %v837 = vmul.f32 1.0, %v836
        %v838 = vrcp.pop %v832
        %v839 = vmul.f32 1.0, %v838
        %v840 = vrcp.pop %v833
        %v841 = vmul.f32 1.0, %v840
        %v842 = vtanh.pop %v792
        %v843 = vtanh.pop %v793
        %v844 = vtanh.pop %v794
        %v845 = vtanh.pop %v795
        %v846 = vmul.f32 %v835, %v842
        %v847 = vmul.f32 %v837, %v843
        %v848 = vmul.f32 %v839, %v844
        %v849 = vmul.f32 %v841, %v845
        %850 = vst [vmem:[%s398] sm:$0xff] %v846
        %851 = vst [vmem:[%s398 + $0x8] sm:$0xff] %v847
        %852 = vst [vmem:[%s398 + $0x10] sm:$0xff] %v848
        %853 = vst [vmem:[%s398 + $0x18] sm:$0xff] %v849
        %854 = vst [vmem:[%s405] sm:$0xff] %v792
        %855 = vst [vmem:[%s405 + $0x8] sm:$0xff] %v793
        %856 = vst [vmem:[%s405 + $0x10] sm:$0xff] %v794
        %857 = vst [vmem:[%s405 + $0x18] sm:$0xff] %v795
        %s858 = sand.u32 %s178, 1
        %s859 = scalar_lea.sflag [#allocation4], %s858
        %s860 = sand.u32 %s178, 1
        %s861 = smul.addr %s860, 32
        %s862 = scalar_lea.vmem [#allocation9], %s861
        %s863 = sand.u32 %s204, 1
        %s864 = scalar_lea.sflag [#allocation11], %s863
        %s865 = sand.u32 %s204, 1
        %s866 = smul.addr %s865, 32
        %s867 = scalar_lea.vmem [#allocation10], %s866
        // Predicated region
        $region80: #{tpu_custom_call.1} parent=62 // pred_check
          %p868 = pneg %p188
        $region81: #{tpu_custom_call.1} parent=62 // pred_check_branch
          %870 = sbr.rel (%p868) target = $region83
        $region82: #{tpu_custom_call.1} parent=62 // pred_region
          %s871 = smul.u32 2, %s29
          %s873 = ssub.s32 512, 512
          %874 = vsyncadd %s859, %s873
          %s875 = smul.addr %s871, 128
          %s876 = scalar_lea.hbm %s6, %s875
          %s877 = sshll.u32 %s862, 4
          %s878 = int_to_ptr.vmem [resolvable:$true] %s877
          %883 = dma.vmem_to_hbm [thread:$0]  %s878, 512, %s876, %s859, 256, 512, 16
        $region83: #{tpu_custom_call.1} parent=62 // pred_fallthru
          _
        // Predicated region
        $region84: #{tpu_custom_call.1} parent=62 // pred_check
          %p884 = pneg %p214
        $region85: #{tpu_custom_call.1} parent=62 // pred_check_branch
          %886 = sbr.rel (%p884) target = $region87
        $region86: #{tpu_custom_call.1} parent=62 // pred_region
          %s887 = smul.u32 2, %s29
          %s889 = ssub.s32 512, 512
          %890 = vsyncadd %s864, %s889
          %s891 = smul.addr %s887, 128
          %s892 = scalar_lea.hbm %s7, %s891
          %s893 = sshll.u32 %s867, 4
          %s894 = int_to_ptr.vmem [resolvable:$true] %s893
          %899 = dma.vmem_to_hbm [thread:$0]  %s894, 512, %s892, %s864, 256, 512, 16
        $region87: #{tpu_custom_call.1} parent=62 // pred_fallthru
          _
      $region63: #{tpu_custom_call.1} parent=5 // pred_fallthru
        _
      %p900 = scmp.le.s32.totalorder 2, %s24
      // Predicated region
      $region88: #{tpu_custom_call.1} parent=5 // pred_check
        %p901 = pneg %p900
      $region89: #{tpu_custom_call.1} parent=5 // pred_check_branch
        %903 = sbr.rel (%p901) target = $region91
      $region90: #{tpu_custom_call.1} parent=5 // pred_region
        %s904 = ssub.s32 %s24, 2
        // Predicated region
        $region92: #{tpu_custom_call.1} parent=90 // pred_check
          %p905 = pneg %p194
        $region93: #{tpu_custom_call.1} parent=90 // pred_check_branch
          %907 = sbr.rel (%p905) target = $region95
        $region94: #{tpu_custom_call.1} parent=90 // pred_region
          %s908 = sand.u32 %s179, 1
          %s909 = scalar_lea.sflag [#allocation4], %s908
          %s910 = sand.u32 %s179, 1
          %s911 = smul.addr %s910, 32
          %s912 = scalar_lea.vmem [#allocation9], %s911
          %913 = dma.done %s909, 512
        $region95: #{tpu_custom_call.1} parent=90 // pred_fallthru
          _
        // Predicated region
        $region96: #{tpu_custom_call.1} parent=90 // pred_check
          %p914 = pneg %p220
        $region97: #{tpu_custom_call.1} parent=90 // pred_check_branch
          %916 = sbr.rel (%p914) target = $region99
        $region98: #{tpu_custom_call.1} parent=90 // pred_region
          %s917 = sand.u32 %s205, 1
          %s918 = scalar_lea.sflag [#allocation11], %s917
          %s919 = sand.u32 %s205, 1
          %s920 = smul.addr %s919, 32
          %s921 = scalar_lea.vmem [#allocation10], %s920
          %922 = dma.done %s918, 512
        $region99: #{tpu_custom_call.1} parent=90 // pred_fallthru
          _
      $region91: #{tpu_custom_call.1} parent=5 // pred_fallthru
        _
    $region6: #{tpu_custom_call.1} parent=1 // loop_footer
      %s28 = sadd.s32 1, %s24
    $region7: #{tpu_custom_call.1} parent=1 // loop_footer_branch
      %23 = sbr.rel target = $region3
    $region8: #{tpu_custom_call.1} parent=1 // loop_exit
      _
    %923 = vsyncpa [#allocation3], 1
    %s924 = scalar_lea.sflag [#allocation3], 1
    %925 = vsyncpa %s924, 1
    %926 = vsyncpa [#allocation6], 1
    %s927 = scalar_lea.sflag [#allocation6], 1
    %928 = vsyncpa %s927, 1
    %929 = vsyncpa [#allocation4], 1
    %s930 = scalar_lea.sflag [#allocation4], 1
    %931 = vsyncpa %s930, 1
    %932 = vsyncpa [#allocation11], 1
    %s933 = scalar_lea.sflag [#allocation11], 1
    %934 = vsyncpa %s933, 1

</llo_original>
